<compile_context>
chip_gen: v7x
topology: tpu7x:2x2x1
jax: 0.10.0
libtpu: 0.0.40
codegen_flags: <defaults>
</compile_context>

<pallas_src>
import jax
import jax.numpy as jnp
from jax.experimental import pallas as pl
from jax.experimental.pallas import tpu as pltpu


_HIDDEN = (274, 135, 65, 30, 10)
_LANE = 128       # lane width: final output dim padded to this
_ROW_ALIGN = 16   # batch-tile row alignment (bf16 sublane packing)


def _pad_to(n, m):
    return ((n + m - 1) // m) * m


def mlp_kernel(x_ref,
               w1, w2, w3, w4, w5, w6,
               b1, b2, b3, b4, b5, b6,
               o_ref):
    """One batch tile: 6 chained bf16 MXU matmuls (f32 accumulation),
    f32 bias-add + ReLU between layers 1..5."""

    def layer(h, w_ref, b_ref, relu):
        w = w_ref[...]                                    # bf16, VMEM resident
        y = jnp.dot(h.astype(w.dtype), w,                 # bf16 x bf16 -> f32 MXU
                    preferred_element_type=jnp.float32)
        y = y + b_ref[...]                                # (1, out) f32 broadcast
        if relu:
            y = jnp.maximum(y, 0.0)
        return y

    h = x_ref[...]                                        # bf16 input tile
    h = layer(h, w1, b1, relu=True)
    h = layer(h, w2, b2, relu=True)
    h = layer(h, w3, b3, relu=True)
    h = layer(h, w4, b4, relu=True)
    h = layer(h, w5, b5, relu=True)
    h = layer(h, w6, b6, relu=False)
    o_ref[...] = h.astype(o_ref.dtype)


def init_mlp_params(key, num_features, num_classes):
    """Deterministic init mimicking torch.nn.Linear (uniform +/- 1/sqrt(fan_in)).
    Weights are produced directly in (in, out) layout."""
    dims = [num_features, *_HIDDEN, num_classes]
    params = []
    for i in range(6):
        fan_in, fan_out = dims[i], dims[i + 1]
        key, kw, kb = jax.random.split(key, 3)
        bound = 1.0 / jnp.sqrt(jnp.float32(fan_in))
        w = jax.random.uniform(kw, (fan_in, fan_out), jnp.float32, -bound, bound)
        b = jax.random.uniform(kb, (fan_out,), jnp.float32, -bound, bound)
        params.append((w, b))
    return params


def prepare_kernel_params(params, weight_dtype=jnp.bfloat16):
    """One-time prep reused every call.

    Weights -> weight_dtype (bf16: native MXU operand).  Only the LAST layer's
    output dim is zero-padded to a multiple of 128 (lane-dense output block);
    hidden dims stay natural -- weight BlockSpecs use full array shapes so no
    (8,128) alignment applies, and skipping hidden-dim padding avoids inflating
    K/N of every layer.  Zero padding of the final columns is exact."""
    out_dim = params[-1][0].shape[1]
    out_dim_p = _pad_to(out_dim, _LANE)

    w_list, b_list = [], []
    for i, (w, b) in enumerate(params):
        if i == len(params) - 1 and out_dim_p != out_dim:
            w = jnp.zeros((w.shape[0], out_dim_p), w.dtype).at[:, :out_dim].set(w)
            b = jnp.zeros((out_dim_p,), b.dtype).at[:out_dim].set(b)
        w_list.append(w.astype(weight_dtype))
        b_list.append(b.astype(jnp.float32).reshape(1, -1))   # f32 bias row

    return {
        "w": tuple(w_list),
        "b": tuple(b_list),
        "in_dim": params[0][0].shape[0],
        "out_dim": out_dim,
        "out_dim_p": out_dim_p,
    }


def _choose_batch_tile(B, tb_max=1024, min_steps=2):
    """Largest aligned tile <= tb_max that splits the batch nearly evenly
    (low tail waste) and yields >= min_steps grid steps when the batch allows
    (so 'parallel' semantics can shard across v7x's two TensorCores)."""
    n = max(1, -(-B // tb_max))                  # fewest steps with tb_max
    if n < min_steps and B > min_steps * _ROW_ALIGN:
        n = min_steps
    return _pad_to(-(-B // n), _ROW_ALIGN)


def mlp_forward(x, kp, tb_max=1024, out_dtype=jnp.bfloat16):
    """Run the fused MLP kernel over a batch-tiled 'parallel' grid."""
    B, F = x.shape
    assert F == kp["in_dim"], (F, kp["in_dim"])
    w, b = kp["w"], kp["b"]
    out_dim_p = kp["out_dim_p"]

    TB = _choose_batch_tile(B, tb_max)
    Bp = _pad_to(B, TB)
    x = x.astype(jnp.bfloat16)                   # bf16 dot operand; halves x DMA
    if Bp != B:
        x = jnp.zeros((Bp, F), x.dtype).at[:B, :].set(x)

    grid = (Bp // TB,)
    x_spec = pl.BlockSpec((TB, F), lambda i: (i, 0))
    out_spec = pl.BlockSpec((TB, out_dim_p), lambda i: (i, 0))
    # Constant index_maps -> weights/biases DMA'd once, stay VMEM-resident.
    w_specs = [pl.BlockSpec(wi.shape, lambda i: (0, 0)) for wi in w]
    b_specs = [pl.BlockSpec(bi.shape, lambda i: (0, 0)) for bi in b]

    out_p = pl.pallas_call(
        mlp_kernel,
        out_shape=jax.ShapeDtypeStruct((Bp, out_dim_p), out_dtype),
        grid=grid,
        in_specs=[x_spec] + w_specs + b_specs,
        out_specs=out_spec,
        compiler_params=pltpu.CompilerParams(
            dimension_semantics=("parallel",)),
    )(x, *w, *b)

    return out_p[:B, :kp["out_dim"]]


def mlp_reference(x, params):
    h = x
    for i, (w, b) in enumerate(params):
        h = h @ w + b
        if i < len(params) - 1:
            h = jnp.maximum(h, 0.0)
    return h


if __name__ == "__main__":
    num_features = 32
    num_classes = 5
    batch = 2

    key = jax.random.PRNGKey(0)
    key, kx = jax.random.split(key)
    x = jax.random.normal(kx, (batch, num_features), jnp.float32)
    params = init_mlp_params(key, num_features, num_classes)

    # One-time param prep; reuse this pytree for every forward call.
    kp = prepare_kernel_params(params)

    out = jax.block_until_ready(mlp_forward(x, kp))
    assert out.shape == (batch, num_classes), out.shape

    # Kernel uses bf16 MXU operands (f32 accumulation) and bf16 output, so
    # compare against the f32 reference with bf16-level tolerance.
    ref = mlp_reference(x, params)
    out_f32 = out.astype(jnp.float32)
    max_err = jnp.max(jnp.abs(out_f32 - ref))
    assert jnp.allclose(out_f32, ref, atol=3e-2, rtol=3e-2), (out_f32, ref, max_err)
    print("KERNEL_OK")
</pallas_src>

<mosaic_0001>
module attributes {stable_mosaic.version = 11 : i64} {
  func.func @mlp_kernel(%arg0: i32, %arg1: memref<16x32xbf16, #tpu.memory_space<vmem>>, %arg2: memref<32x274xbf16, #tpu.memory_space<vmem>>, %arg3: memref<274x135xbf16, #tpu.memory_space<vmem>>, %arg4: memref<135x65xbf16, #tpu.memory_space<vmem>>, %arg5: memref<65x30xbf16, #tpu.memory_space<vmem>>, %arg6: memref<30x10xbf16, #tpu.memory_space<vmem>>, %arg7: memref<10x128xbf16, #tpu.memory_space<vmem>>, %arg8: memref<1x274xf32, #tpu.memory_space<vmem>>, %arg9: memref<1x135xf32, #tpu.memory_space<vmem>>, %arg10: memref<1x65xf32, #tpu.memory_space<vmem>>, %arg11: memref<1x30xf32, #tpu.memory_space<vmem>>, %arg12: memref<1x10xf32, #tpu.memory_space<vmem>>, %arg13: memref<1x128xf32, #tpu.memory_space<vmem>>, %arg14: memref<16x128xbf16, #tpu.memory_space<vmem>>) attributes {dimension_semantics = [#tpu.dimension_semantics<parallel>], iteration_bounds = array<i64: 1>, scalar_prefetch = 0 : i64, scratch_operands = 0 : i64, tpu.core_type = #tpu.core_type<tc>, window_params = [{transform_indices = @transform_0, window_bounds = array<i64: 16, 32>}, {pipeline_mode = #tpu.pipeline_mode<synchronous>, transform_indices = @transform_1, window_bounds = array<i64: 32, 274>}, {pipeline_mode = #tpu.pipeline_mode<synchronous>, transform_indices = @transform_2, window_bounds = array<i64: 274, 135>}, {pipeline_mode = #tpu.pipeline_mode<synchronous>, transform_indices = @transform_3, window_bounds = array<i64: 135, 65>}, {pipeline_mode = #tpu.pipeline_mode<synchronous>, transform_indices = @transform_4, window_bounds = array<i64: 65, 30>}, {pipeline_mode = #tpu.pipeline_mode<synchronous>, transform_indices = @transform_5, window_bounds = array<i64: 30, 10>}, {pipeline_mode = #tpu.pipeline_mode<synchronous>, transform_indices = @transform_6, window_bounds = array<i64: 10, 128>}, {pipeline_mode = #tpu.pipeline_mode<synchronous>, transform_indices = @transform_7, window_bounds = array<i64: 1, 274>}, {pipeline_mode = #tpu.pipeline_mode<synchronous>, transform_indices = @transform_8, window_bounds = array<i64: 1, 135>}, {pipeline_mode = #tpu.pipeline_mode<synchronous>, transform_indices = @transform_9, window_bounds = array<i64: 1, 65>}, {pipeline_mode = #tpu.pipeline_mode<synchronous>, transform_indices = @transform_10, window_bounds = array<i64: 1, 30>}, {pipeline_mode = #tpu.pipeline_mode<synchronous>, transform_indices = @transform_11, window_bounds = array<i64: 1, 10>}, {pipeline_mode = #tpu.pipeline_mode<synchronous>, transform_indices = @transform_12, window_bounds = array<i64: 1, 128>}, {transform_indices = @transform_13, window_bounds = array<i64: 16, 128>}]} {
    %c0 = arith.constant 0 : index
    %c0_0 = arith.constant 0 : index
    %0 = vector.load %arg1[%c0, %c0_0] : memref<16x32xbf16, #tpu.memory_space<vmem>>, vector<16x32xbf16>
    %c0_1 = arith.constant 0 : index
    %c0_2 = arith.constant 0 : index
    %1 = vector.load %arg2[%c0_1, %c0_2] : memref<32x274xbf16, #tpu.memory_space<vmem>>, vector<32x274xbf16>
    %cst = arith.constant dense<0.000000e+00> : vector<16x274xf32>
    %2 = tpu.matmul %0, %1, %cst {dimension_numbers = #tpu.dot_dimension_numbers<[1], [0], [0], [1], [0, 0, 1, 1], [], []>} : vector<16x32xbf16>, vector<32x274xbf16>, vector<16x274xf32> -> vector<16x274xf32>
    %c0_3 = arith.constant 0 : index
    %c0_4 = arith.constant 0 : index
    %3 = vector.load %arg8[%c0_3, %c0_4] : memref<1x274xf32, #tpu.memory_space<vmem>>, vector<1x274xf32>
    %4 = vector.broadcast %3 : vector<1x274xf32> to vector<16x274xf32>
    %5 = arith.addf %2, %4 : vector<16x274xf32>
    %cst_5 = arith.constant 0.000000e+00 : f32
    %6 = vector.broadcast %cst_5 : f32 to vector<16x274xf32>
    %7 = arith.maximumf %5, %6 : vector<16x274xf32>
    %c0_6 = arith.constant 0 : index
    %c0_7 = arith.constant 0 : index
    %8 = vector.load %arg3[%c0_6, %c0_7] : memref<274x135xbf16, #tpu.memory_space<vmem>>, vector<274x135xbf16>
    %9 = arith.truncf %7 : vector<16x274xf32> to vector<16x274xbf16>
    %cst_8 = arith.constant dense<0.000000e+00> : vector<16x135xf32>
    %10 = tpu.matmul %9, %8, %cst_8 {dimension_numbers = #tpu.dot_dimension_numbers<[1], [0], [0], [1], [0, 0, 1, 1], [], []>} : vector<16x274xbf16>, vector<274x135xbf16>, vector<16x135xf32> -> vector<16x135xf32>
    %c0_9 = arith.constant 0 : index
    %c0_10 = arith.constant 0 : index
    %11 = vector.load %arg9[%c0_9, %c0_10] : memref<1x135xf32, #tpu.memory_space<vmem>>, vector<1x135xf32>
    %12 = vector.broadcast %11 : vector<1x135xf32> to vector<16x135xf32>
    %13 = arith.addf %10, %12 : vector<16x135xf32>
    %cst_11 = arith.constant 0.000000e+00 : f32
    %14 = vector.broadcast %cst_11 : f32 to vector<16x135xf32>
    %15 = arith.maximumf %13, %14 : vector<16x135xf32>
    %c0_12 = arith.constant 0 : index
    %c0_13 = arith.constant 0 : index
    %16 = vector.load %arg4[%c0_12, %c0_13] : memref<135x65xbf16, #tpu.memory_space<vmem>>, vector<135x65xbf16>
    %17 = arith.truncf %15 : vector<16x135xf32> to vector<16x135xbf16>
    %cst_14 = arith.constant dense<0.000000e+00> : vector<16x65xf32>
    %18 = tpu.matmul %17, %16, %cst_14 {dimension_numbers = #tpu.dot_dimension_numbers<[1], [0], [0], [1], [0, 0, 1, 1], [], []>} : vector<16x135xbf16>, vector<135x65xbf16>, vector<16x65xf32> -> vector<16x65xf32>
    %c0_15 = arith.constant 0 : index
    %c0_16 = arith.constant 0 : index
    %19 = vector.load %arg10[%c0_15, %c0_16] : memref<1x65xf32, #tpu.memory_space<vmem>>, vector<1x65xf32>
    %20 = vector.broadcast %19 : vector<1x65xf32> to vector<16x65xf32>
    %21 = arith.addf %18, %20 : vector<16x65xf32>
    %cst_17 = arith.constant 0.000000e+00 : f32
    %22 = vector.broadcast %cst_17 : f32 to vector<16x65xf32>
    %23 = arith.maximumf %21, %22 : vector<16x65xf32>
    %c0_18 = arith.constant 0 : index
    %c0_19 = arith.constant 0 : index
    %24 = vector.load %arg5[%c0_18, %c0_19] : memref<65x30xbf16, #tpu.memory_space<vmem>>, vector<65x30xbf16>
    %25 = arith.truncf %23 : vector<16x65xf32> to vector<16x65xbf16>
    %cst_20 = arith.constant dense<0.000000e+00> : vector<16x30xf32>
    %26 = tpu.matmul %25, %24, %cst_20 {dimension_numbers = #tpu.dot_dimension_numbers<[1], [0], [0], [1], [0, 0, 1, 1], [], []>} : vector<16x65xbf16>, vector<65x30xbf16>, vector<16x30xf32> -> vector<16x30xf32>
    %c0_21 = arith.constant 0 : index
    %c0_22 = arith.constant 0 : index
    %27 = vector.load %arg11[%c0_21, %c0_22] : memref<1x30xf32, #tpu.memory_space<vmem>>, vector<1x30xf32>
    %28 = vector.broadcast %27 : vector<1x30xf32> to vector<16x30xf32>
    %29 = arith.addf %26, %28 : vector<16x30xf32>
    %cst_23 = arith.constant 0.000000e+00 : f32
    %30 = vector.broadcast %cst_23 : f32 to vector<16x30xf32>
    %31 = arith.maximumf %29, %30 : vector<16x30xf32>
    %c0_24 = arith.constant 0 : index
    %c0_25 = arith.constant 0 : index
    %32 = vector.load %arg6[%c0_24, %c0_25] : memref<30x10xbf16, #tpu.memory_space<vmem>>, vector<30x10xbf16>
    %33 = arith.truncf %31 : vector<16x30xf32> to vector<16x30xbf16>
    %cst_26 = arith.constant dense<0.000000e+00> : vector<16x10xf32>
    %34 = tpu.matmul %33, %32, %cst_26 {dimension_numbers = #tpu.dot_dimension_numbers<[1], [0], [0], [1], [0, 0, 1, 1], [], []>} : vector<16x30xbf16>, vector<30x10xbf16>, vector<16x10xf32> -> vector<16x10xf32>
    %c0_27 = arith.constant 0 : index
    %c0_28 = arith.constant 0 : index
    %35 = vector.load %arg12[%c0_27, %c0_28] : memref<1x10xf32, #tpu.memory_space<vmem>>, vector<1x10xf32>
    %36 = vector.broadcast %35 : vector<1x10xf32> to vector<16x10xf32>
    %37 = arith.addf %34, %36 : vector<16x10xf32>
    %cst_29 = arith.constant 0.000000e+00 : f32
    %38 = vector.broadcast %cst_29 : f32 to vector<16x10xf32>
    %39 = arith.maximumf %37, %38 : vector<16x10xf32>
    %c0_30 = arith.constant 0 : index
    %c0_31 = arith.constant 0 : index
    %40 = vector.load %arg7[%c0_30, %c0_31] : memref<10x128xbf16, #tpu.memory_space<vmem>>, vector<10x128xbf16>
    %41 = arith.truncf %39 : vector<16x10xf32> to vector<16x10xbf16>
    %cst_32 = arith.constant dense<0.000000e+00> : vector<16x128xf32>
    %42 = tpu.matmul %41, %40, %cst_32 {dimension_numbers = #tpu.dot_dimension_numbers<[1], [0], [0], [1], [0, 0, 1, 1], [], []>} : vector<16x10xbf16>, vector<10x128xbf16>, vector<16x128xf32> -> vector<16x128xf32>
    %c0_33 = arith.constant 0 : index
    %c0_34 = arith.constant 0 : index
    %43 = vector.load %arg13[%c0_33, %c0_34] : memref<1x128xf32, #tpu.memory_space<vmem>>, vector<1x128xf32>
    %44 = vector.broadcast %43 : vector<1x128xf32> to vector<16x128xf32>
    %45 = arith.addf %42, %44 : vector<16x128xf32>
    %46 = arith.truncf %45 : vector<16x128xf32> to vector<16x128xbf16>
    %c0_35 = arith.constant 0 : index
    %c0_36 = arith.constant 0 : index
    %47 = vector.load %arg14[%c0_35, %c0_36] : memref<16x128xbf16, #tpu.memory_space<vmem>>, vector<16x128xbf16>
    tpu.vector_store %arg14[%c0_35, %c0_36], %46 {strides = array<i32>} : memref<16x128xbf16, #tpu.memory_space<vmem>>, vector<16x128xbf16>,
    return
  }
  func.func @transform_0(%arg0: i32) -> (i32, i32) {
    %c0_i32 = arith.constant 0 : i32
    %c0_i32_0 = arith.constant 0 : i32
    return %arg0, %c0_i32 : i32, i32
  }
  func.func @transform_1(%arg0: i32) -> (i32, i32) {
    %c0_i32 = arith.constant 0 : i32
    %c0_i32_0 = arith.constant 0 : i32
    %c0_i32_1 = arith.constant 0 : i32
    return %c0_i32, %c0_i32_0 : i32, i32
  }
  func.func @transform_2(%arg0: i32) -> (i32, i32) {
    %c0_i32 = arith.constant 0 : i32
    %c0_i32_0 = arith.constant 0 : i32
    %c0_i32_1 = arith.constant 0 : i32
    return %c0_i32, %c0_i32_0 : i32, i32
  }
  func.func @transform_3(%arg0: i32) -> (i32, i32) {
    %c0_i32 = arith.constant 0 : i32
    %c0_i32_0 = arith.constant 0 : i32
    %c0_i32_1 = arith.constant 0 : i32
    return %c0_i32, %c0_i32_0 : i32, i32
  }
  func.func @transform_4(%arg0: i32) -> (i32, i32) {
    %c0_i32 = arith.constant 0 : i32
    %c0_i32_0 = arith.constant 0 : i32
    %c0_i32_1 = arith.constant 0 : i32
    return %c0_i32, %c0_i32_0 : i32, i32
  }
  func.func @transform_5(%arg0: i32) -> (i32, i32) {
    %c0_i32 = arith.constant 0 : i32
    %c0_i32_0 = arith.constant 0 : i32
    %c0_i32_1 = arith.constant 0 : i32
    return %c0_i32, %c0_i32_0 : i32, i32
  }
  func.func @transform_6(%arg0: i32) -> (i32, i32) {
    %c0_i32 = arith.constant 0 : i32
    %c0_i32_0 = arith.constant 0 : i32
    %c0_i32_1 = arith.constant 0 : i32
    return %c0_i32, %c0_i32_0 : i32, i32
  }
  func.func @transform_7(%arg0: i32) -> (i32, i32) {
    %c0_i32 = arith.constant 0 : i32
    %c0_i32_0 = arith.constant 0 : i32
    %c0_i32_1 = arith.constant 0 : i32
    return %c0_i32, %c0_i32_0 : i32, i32
  }
  func.func @transform_8(%arg0: i32) -> (i32, i32) {
    %c0_i32 = arith.constant 0 : i32
    %c0_i32_0 = arith.constant 0 : i32
    %c0_i32_1 = arith.constant 0 : i32
    return %c0_i32, %c0_i32_0 : i32, i32
  }
  func.func @transform_9(%arg0: i32) -> (i32, i32) {
    %c0_i32 = arith.constant 0 : i32
    %c0_i32_0 = arith.constant 0 : i32
    %c0_i32_1 = arith.constant 0 : i32
    return %c0_i32, %c0_i32_0 : i32, i32
  }
  func.func @transform_10(%arg0: i32) -> (i32, i32) {
    %c0_i32 = arith.constant 0 : i32
    %c0_i32_0 = arith.constant 0 : i32
    %c0_i32_1 = arith.constant 0 : i32
    return %c0_i32, %c0_i32_0 : i32, i32
  }
  func.func @transform_11(%arg0: i32) -> (i32, i32) {
    %c0_i32 = arith.constant 0 : i32
    %c0_i32_0 = arith.constant 0 : i32
    %c0_i32_1 = arith.constant 0 : i32
    return %c0_i32, %c0_i32_0 : i32, i32
  }
  func.func @transform_12(%arg0: i32) -> (i32, i32) {
    %c0_i32 = arith.constant 0 : i32
    %c0_i32_0 = arith.constant 0 : i32
    %c0_i32_1 = arith.constant 0 : i32
    return %c0_i32, %c0_i32_0 : i32, i32
  }
  func.func @transform_13(%arg0: i32) -> (i32, i32) {
    %c0_i32 = arith.constant 0 : i32
    %c0_i32_0 = arith.constant 0 : i32
    return %arg0, %c0_i32 : i32, i32
  }
}

</mosaic_0001>

<llo_original>
// kernel: tpu_custom_call.1
$region0: #{tpu_custom_call.1}
  #allocation0 [shape = 'u32[]', space=smem, size = 0x4, offset = 0x4, fixed_abs, tag = 'smem constant byte address 0x4 - core index']
  #allocation1 [shape = 'u32[144,128]{1,0:T(1,128)}', space=vmem, size = 0x12000, scoped, tag = 'internal scratch']
  %s0 = inlined_call_operand.vmem [shape: bf16[16,32], index: 0, kind: input, shape index: {}]
  %s1 = inlined_call_operand.vmem [shape: bf16[32,274], index: 1, kind: input, shape index: {}]
  %s2 = inlined_call_operand.vmem [shape: bf16[274,135], index: 2, kind: input, shape index: {}]
  %s3 = inlined_call_operand.vmem [shape: bf16[135,65], index: 3, kind: input, shape index: {}]
  %s4 = inlined_call_operand.vmem [shape: bf16[65,30], index: 4, kind: input, shape index: {}]
  %s5 = inlined_call_operand.vmem [shape: bf16[30,10], index: 5, kind: input, shape index: {}]
  %s6 = inlined_call_operand.vmem [shape: bf16[10,128], index: 6, kind: input, shape index: {}]
  %s7 = inlined_call_operand.vmem [shape: f32[1,274], index: 7, kind: input, shape index: {}]
  %s8 = inlined_call_operand.vmem [shape: f32[1,135], index: 8, kind: input, shape index: {}]
  %s9 = inlined_call_operand.vmem [shape: f32[1,65], index: 9, kind: input, shape index: {}]
  %s10 = inlined_call_operand.vmem [shape: f32[1,30], index: 10, kind: input, shape index: {}]
  %s11 = inlined_call_operand.vmem [shape: f32[1,10], index: 11, kind: input, shape index: {}]
  %s12 = inlined_call_operand.vmem [shape: f32[1,128], index: 12, kind: input, shape index: {}]
  %s13 = inlined_call_operand.hbm [shape: bf16[16,128], index: 13, kind: output, shape index: {}]
  %s14 = sld [smem:[#allocation0]]
  $region62: #{tpu_custom_call.1} parent=0
    _
  %s16 = ssub.s32 1, %s14
  %s17 = scalar_select 0, %s16, %s14
  $region1: #{tpu_custom_call.1} parent=0
    #allocation2 [shape = 'u8[4096]{0}', space=vmem, size = 0x1000, scoped, tag = 'output window, operand 0, single buffered']
    #allocation3 [shape = 's32[1]{0}', space=sflag, size = 0x4, scoped, tag = 'scoped memory for tpu_custom_call.1']
    %18 = vsyncpa [#allocation3], 0
    // Predicated region
    $region2: #{tpu_custom_call.1} parent=1 // pred_check
      _
    $region3: #{tpu_custom_call.1} parent=1 // pred_check_branch
      %20 = sbr.rel (0) target = $region5
    $region4: #{tpu_custom_call.1} parent=1 // pred_region
      _
    $region5: #{tpu_custom_call.1} parent=1 // pred_fallthru
      _
    // Predicated region
    $region6: #{tpu_custom_call.1} parent=1 // pred_check
      _
    $region7: #{tpu_custom_call.1} parent=1 // pred_check_branch
      %22 = sbr.rel (0) target = $region9
    $region8: #{tpu_custom_call.1} parent=1 // pred_region
      _
    $region9: #{tpu_custom_call.1} parent=1 // pred_fallthru
      _
    // Predicated region
    $region10: #{tpu_custom_call.1} parent=1 // pred_check
      _
    $region11: #{tpu_custom_call.1} parent=1 // pred_check_branch
      %24 = sbr.rel (0) target = $region13
    $region12: #{tpu_custom_call.1} parent=1 // pred_region
      _
    $region13: #{tpu_custom_call.1} parent=1 // pred_fallthru
      _
    // Predicated region
    $region14: #{tpu_custom_call.1} parent=1 // pred_check
      _
    $region15: #{tpu_custom_call.1} parent=1 // pred_check_branch
      %26 = sbr.rel (0) target = $region17
    $region16: #{tpu_custom_call.1} parent=1 // pred_region
      _
    $region17: #{tpu_custom_call.1} parent=1 // pred_fallthru
      _
    // Predicated region
    $region18: #{tpu_custom_call.1} parent=1 // pred_check
      _
    $region19: #{tpu_custom_call.1} parent=1 // pred_check_branch
      %28 = sbr.rel (0) target = $region21
    $region20: #{tpu_custom_call.1} parent=1 // pred_region
      _
    $region21: #{tpu_custom_call.1} parent=1 // pred_fallthru
      _
    // Predicated region
    $region22: #{tpu_custom_call.1} parent=1 // pred_check
      _
    $region23: #{tpu_custom_call.1} parent=1 // pred_check_branch
      %30 = sbr.rel (0) target = $region25
    $region24: #{tpu_custom_call.1} parent=1 // pred_region
      _
    $region25: #{tpu_custom_call.1} parent=1 // pred_fallthru
      _
    // Predicated region
    $region26: #{tpu_custom_call.1} parent=1 // pred_check
      _
    $region27: #{tpu_custom_call.1} parent=1 // pred_check_branch
      %32 = sbr.rel (0) target = $region29
    $region28: #{tpu_custom_call.1} parent=1 // pred_region
      _
    $region29: #{tpu_custom_call.1} parent=1 // pred_fallthru
      _
    // Predicated region
    $region30: #{tpu_custom_call.1} parent=1 // pred_check
      _
    $region31: #{tpu_custom_call.1} parent=1 // pred_check_branch
      %34 = sbr.rel (0) target = $region33
    $region32: #{tpu_custom_call.1} parent=1 // pred_region
      _
    $region33: #{tpu_custom_call.1} parent=1 // pred_fallthru
      _
    // Predicated region
    $region34: #{tpu_custom_call.1} parent=1 // pred_check
      _
    $region35: #{tpu_custom_call.1} parent=1 // pred_check_branch
      %36 = sbr.rel (0) target = $region37
    $region36: #{tpu_custom_call.1} parent=1 // pred_region
      _
    $region37: #{tpu_custom_call.1} parent=1 // pred_fallthru
      _
    // Predicated region
    $region38: #{tpu_custom_call.1} parent=1 // pred_check
      _
    $region39: #{tpu_custom_call.1} parent=1 // pred_check_branch
      %38 = sbr.rel (0) target = $region41
    $region40: #{tpu_custom_call.1} parent=1 // pred_region
      _
    $region41: #{tpu_custom_call.1} parent=1 // pred_fallthru
      _
    // Predicated region
    $region42: #{tpu_custom_call.1} parent=1 // pred_check
      _
    $region43: #{tpu_custom_call.1} parent=1 // pred_check_branch
      %40 = sbr.rel (0) target = $region45
    $region44: #{tpu_custom_call.1} parent=1 // pred_region
      _
    $region45: #{tpu_custom_call.1} parent=1 // pred_fallthru
      _
    // Predicated region
    $region46: #{tpu_custom_call.1} parent=1 // pred_check
      _
    $region47: #{tpu_custom_call.1} parent=1 // pred_check_branch
      %42 = sbr.rel (0) target = $region49
    $region48: #{tpu_custom_call.1} parent=1 // pred_region
      _
    $region49: #{tpu_custom_call.1} parent=1 // pred_fallthru
      _
    // Predicated region
    $region50: #{tpu_custom_call.1} parent=1 // pred_check
      _
    $region51: #{tpu_custom_call.1} parent=1 // pred_check_branch
      %44 = sbr.rel (0) target = $region53
    $region52: #{tpu_custom_call.1} parent=1 // pred_region
      _
    $region53: #{tpu_custom_call.1} parent=1 // pred_fallthru
      _
    %v46 = vld [vmem:[%s0] sm:$0xf]
    %v47 = vld [vmem:[%s0 + $0x4] sm:$0xf]
    %v48 = vld [vmem:[%s1] sm:$0xff]
    %v49 = vld [vmem:[%s1 + $0x8] sm:$0xf]
    %v50 = vld [vmem:[%s1 + $0xc] sm:$0xff]
    %v51 = vld [vmem:[%s1 + $0x14] sm:$0xf]
    %v52 = vld [vmem:[%s1 + $0x18] sm:$0xff]
    %v53 = vld [vmem:[%s1 + $0x20] sm:$0xf]
    %v54 = vld [vmem:[%s1 + $0x24] sm:$0xff]
    %v55 = vld [vmem:[%s1 + $0x2c] sm:$0xf]
    %v56 = vld [vmem:[%s7] sm:$0x7]
    %v58 = vlaneseq
    %v59 = vshrl.u32 %v58, 7
    %v60 = vsub.s32 0, %v59
    %v61 = vrot.slane %v56, %v60
    %v62 = vlaneseq
    %v63 = vshrl.u32 %v62, 7
    %v64 = vsub.s32 1, %v63
    %v65 = vrot.slane %v56, %v64
    %v66 = vlaneseq
    %v67 = vshrl.u32 %v66, 7
    %v68 = vsub.s32 2, %v67
    %v69 = vrot.slane %v56, %v68
    %v75 = vunpack.c.l.b16 %v46
    %v76 = vunpack.c.l.b16 %v47
    %v77 = vpack.c.b16 %v76, %v75
    %v86 = vunpack.c.l.b16 %v48
    %v87 = vunpack.c.h.b16 %v48
    %v88 = vunpack.c.l.b16 %v49
    %v89 = vunpack.c.l.b16 %v50
    %v90 = vunpack.c.h.b16 %v50
    %v91 = vunpack.c.l.b16 %v51
    %v92 = vunpack.c.l.b16 %v52
    %v93 = vunpack.c.h.b16 %v52
    %v94 = vunpack.c.l.b16 %v53
    %v95 = vunpack.c.l.b16 %v54
    %v96 = vunpack.c.h.b16 %v54
    %v97 = vunpack.c.l.b16 %v55
    %v98 = vpack.c.b16 %v89, %v86
    %v99 = vpack.c.b16 %v90, %v87
    %v100 = vpack.c.b16 %v91, %v88
    %v101 = vpack.c.b16 %v95, %v92
    %v102 = vpack.c.b16 %v96, %v93
    %v103 = vpack.c.b16 %v97, %v94
    %vm110 = vcmask 261120
    %v112 = vsel %vm110, %v77, 0
    %114 = vmatprep.subr.bf16.mxu0 %v99
    %115 = vmatpush1.bf16.msra.mxu0 %v98
    %116 = vmatprep.subr.bf16.mxu0 %v102
    %117 = vmatpush1.bf16.msra.mxu0 %v101
    %118 = vmatprep.subr.bf16.mxu0 0
    %119 = vmatpush1.bf16.msra.mxu0 0
    %120 = vmatprep.subr.bf16.mxu0 0
    %121 = vmatpush1.bf16.msra.mxu0 0
    %122 = vmatprep.subr.bf16.mxu0 0
    %123 = vmatpush1.bf16.msra.mxu0 0
    %124 = vmatprep.subr.bf16.mxu0 0
    %125 = vmatpush1.bf16.msra.mxu0 0
    %126 = vmatprep.subr.bf16.mxu0 0
    %127 = vmatpush1.bf16.msra.mxu0 0
    %128 = vmatprep.subr.bf16.mxu0 0
    %129 = vmatpush1.bf16.msra.mxu0 0
    %130 = vmatprep.subr.bf16.mxu0 0
    %131 = vmatpush1.bf16.msra.mxu0 0
    %132 = vmatprep.subr.bf16.mxu0 0
    %133 = vmatpush1.bf16.msra.mxu0 0
    %134 = vmatprep.subr.bf16.mxu0 0
    %135 = vmatpush1.bf16.msra.mxu0 0
    %136 = vmatprep.subr.bf16.mxu0 0
    %137 = vmatpush1.bf16.msra.mxu0 0
    %138 = vmatprep.subr.bf16.mxu0 0
    %139 = vmatpush1.bf16.msra.mxu0 0
    %140 = vmatprep.subr.bf16.mxu0 0
    %141 = vmatpush1.bf16.msra.mxu0 0
    %142 = vmatprep.subr.bf16.mxu0 0
    %143 = vmatpush1.bf16.msra.mxu0 0
    %144 = vmatprep.subr.bf16.mxu0 0
    %145 = vmatpush1.bf16.msra.mxu0 0
    %146 = vmatprep.mubr.bf16.mxu0 0
    %147 = vmatmul.mubr.bf16.gmra.mrb[0].mxu0 %v112
    %v148 = vpop.f32.mrb[0].mxu0
    %v149 = vadd.f32 %v61, %v148
    %v150 = vpop.f32.mrb[0].mxu0
    %v151 = vadd.f32 %v65, %v150
    %v152 = vpop.f32.mrb[0].mxu0
    %v153 = vadd.f32 %v61, %v152
    %v154 = vpop.f32.mrb[0].mxu0
    %v155 = vadd.f32 %v65, %v154
    %156 = vdwg.mxu0
    %157 = vmatprep.subr.bf16.mxu0 0
    %158 = vmatpush1.bf16.msra.mxu0 %v100
    %159 = vmatprep.subr.bf16.mxu0 0
    %160 = vmatpush1.bf16.msra.mxu0 %v103
    %161 = vmatprep.subr.bf16.mxu0 0
    %162 = vmatpush1.bf16.msra.mxu0 0
    %163 = vmatprep.subr.bf16.mxu0 0
    %164 = vmatpush1.bf16.msra.mxu0 0
    %165 = vmatprep.subr.bf16.mxu0 0
    %166 = vmatpush1.bf16.msra.mxu0 0
    %167 = vmatprep.subr.bf16.mxu0 0
    %168 = vmatpush1.bf16.msra.mxu0 0
    %169 = vmatprep.subr.bf16.mxu0 0
    %170 = vmatpush1.bf16.msra.mxu0 0
    %171 = vmatprep.subr.bf16.mxu0 0
    %172 = vmatpush1.bf16.msra.mxu0 0
    %173 = vmatprep.subr.bf16.mxu0 0
    %174 = vmatpush1.bf16.msra.mxu0 0
    %175 = vmatprep.subr.bf16.mxu0 0
    %176 = vmatpush1.bf16.msra.mxu0 0
    %177 = vmatprep.subr.bf16.mxu0 0
    %178 = vmatpush1.bf16.msra.mxu0 0
    %179 = vmatprep.subr.bf16.mxu0 0
    %180 = vmatpush1.bf16.msra.mxu0 0
    %181 = vmatprep.subr.bf16.mxu0 0
    %182 = vmatpush1.bf16.msra.mxu0 0
    %183 = vmatprep.subr.bf16.mxu0 0
    %184 = vmatpush1.bf16.msra.mxu0 0
    %185 = vmatprep.subr.bf16.mxu0 0
    %186 = vmatpush1.bf16.msra.mxu0 0
    %187 = vmatprep.subr.bf16.mxu0 0
    %188 = vmatpush1.bf16.msra.mxu0 0
    %189 = vmatprep.mubr.bf16.mxu0 0
    %190 = vmatmul.mubr.bf16.gmra.mrb[0].mxu0 %v112
    %v191 = vpop.f32.mrb[0].mxu0
    %v192 = vadd.f32 %v69, %v191
    %v193 = vpop.f32.mrb[0].mxu0
    %v194 = vpop.f32.mrb[0].mxu0
    %v195 = vadd.f32 %v69, %v194
    %v196 = vpop.f32.mrb[0].mxu0
    %197 = vdwg.mxu0
    %v198 = vmax.f32 %v149, 0.0
    %v199 = vmax.f32 %v151, 0.0
    %v200 = vmax.f32 %v192, 0.0
    %v201 = vmax.f32 %v153, 0.0
    %v202 = vmax.f32 %v155, 0.0
    %v203 = vmax.f32 %v195, 0.0
    %v204 = vld [vmem:[%s2] sm:$0xff]
    %v205 = vld [vmem:[%s2 + $0x8] sm:$0xff]
    %v206 = vld [vmem:[%s2 + $0x10] sm:$0xff]
    %v207 = vld [vmem:[%s2 + $0x18] sm:$0xff]
    %v208 = vld [vmem:[%s2 + $0x20] sm:$0xff]
    %v209 = vld [vmem:[%s2 + $0x28] sm:$0xff]
    %v210 = vld [vmem:[%s2 + $0x30] sm:$0xff]
    %v211 = vld [vmem:[%s2 + $0x38] sm:$0xff]
    %v212 = vld [vmem:[%s2 + $0x40] sm:$0xff]
    %v213 = vld [vmem:[%s2 + $0x48] sm:$0xff]
    %v214 = vld [vmem:[%s2 + $0x50] sm:$0xff]
    %v215 = vld [vmem:[%s2 + $0x58] sm:$0xff]
    %v216 = vld [vmem:[%s2 + $0x60] sm:$0xff]
    %v217 = vld [vmem:[%s2 + $0x68] sm:$0xff]
    %v218 = vld [vmem:[%s2 + $0x70] sm:$0xff]
    %v219 = vld [vmem:[%s2 + $0x78] sm:$0xff]
    %v220 = vld [vmem:[%s2 + $0x80] sm:$0xff]
    %v221 = vld [vmem:[%s2 + $0x88] sm:$0xff]
    %v222 = vld [vmem:[%s2 + $0x90] sm:$0xff]
    %v223 = vld [vmem:[%s2 + $0x98] sm:$0xff]
    %v224 = vld [vmem:[%s2 + $0xa0] sm:$0xff]
    %v225 = vld [vmem:[%s2 + $0xa8] sm:$0xff]
    %v226 = vld [vmem:[%s2 + $0xb0] sm:$0xff]
    %v227 = vld [vmem:[%s2 + $0xb8] sm:$0xff]
    %v228 = vld [vmem:[%s2 + $0xc0] sm:$0xff]
    %v229 = vld [vmem:[%s2 + $0xc8] sm:$0xff]
    %v230 = vld [vmem:[%s2 + $0xd0] sm:$0xff]
    %v231 = vld [vmem:[%s2 + $0xd8] sm:$0xff]
    %v232 = vld [vmem:[%s2 + $0xe0] sm:$0xff]
    %v233 = vld [vmem:[%s2 + $0xe8] sm:$0xff]
    %v234 = vld [vmem:[%s2 + $0xf0] sm:$0xff]
    %v235 = vld [vmem:[%s2 + $0xf8] sm:$0xff]
    %v236 = vld [vmem:[%s2 + $0x100] sm:$0xff]
    %v237 = vld [vmem:[%s2 + $0x108] sm:$0xff]
    %v238 = vld [vmem:[%s2 + $0x110] sm:$0x11]
    %v239 = vpack.c.bf16 %v201, %v198
    %v240 = vpack.c.bf16 %v202, %v199
    %v241 = vpack.c.bf16 %v203, %v200
    %v242 = vld [vmem:[%s8] sm:$0x3]
    %v244 = vlaneseq
    %v245 = vshrl.u32 %v244, 7
    %v246 = vsub.s32 0, %v245
    %v247 = vrot.slane %v242, %v246
    %v248 = vlaneseq
    %v249 = vshrl.u32 %v248, 7
    %v250 = vsub.s32 1, %v249
    %v251 = vrot.slane %v242, %v250
    %v289 = vunpack.c.l.b16 %v204
    %v290 = vunpack.c.h.b16 %v204
    %v291 = vunpack.c.l.b16 %v205
    %v292 = vunpack.c.h.b16 %v205
    %v293 = vunpack.c.l.b16 %v206
    %v294 = vunpack.c.h.b16 %v206
    %v295 = vunpack.c.l.b16 %v207
    %v296 = vunpack.c.h.b16 %v207
    %v297 = vunpack.c.l.b16 %v208
    %v298 = vunpack.c.h.b16 %v208
    %v299 = vunpack.c.l.b16 %v209
    %v300 = vunpack.c.h.b16 %v209
    %v301 = vunpack.c.l.b16 %v210
    %v302 = vunpack.c.h.b16 %v210
    %v303 = vunpack.c.l.b16 %v211
    %v304 = vunpack.c.h.b16 %v211
    %v305 = vunpack.c.l.b16 %v212
    %v306 = vunpack.c.h.b16 %v212
    %v307 = vunpack.c.l.b16 %v213
    %v308 = vunpack.c.h.b16 %v213
    %v309 = vunpack.c.l.b16 %v214
    %v310 = vunpack.c.h.b16 %v214
    %v311 = vunpack.c.l.b16 %v215
    %v312 = vunpack.c.h.b16 %v215
    %v313 = vunpack.c.l.b16 %v216
    %v314 = vunpack.c.h.b16 %v216
    %v315 = vunpack.c.l.b16 %v217
    %v316 = vunpack.c.h.b16 %v217
    %v317 = vunpack.c.l.b16 %v218
    %v318 = vunpack.c.h.b16 %v218
    %v319 = vunpack.c.l.b16 %v219
    %v320 = vunpack.c.h.b16 %v219
    %v321 = vunpack.c.l.b16 %v220
    %v322 = vunpack.c.h.b16 %v220
    %v323 = vunpack.c.l.b16 %v221
    %v324 = vunpack.c.h.b16 %v221
    %v325 = vunpack.c.l.b16 %v222
    %v326 = vunpack.c.h.b16 %v222
    %v327 = vunpack.c.l.b16 %v223
    %v328 = vunpack.c.h.b16 %v223
    %v329 = vunpack.c.l.b16 %v224
    %v330 = vunpack.c.h.b16 %v224
    %v331 = vunpack.c.l.b16 %v225
    %v332 = vunpack.c.h.b16 %v225
    %v333 = vunpack.c.l.b16 %v226
    %v334 = vunpack.c.h.b16 %v226
    %v335 = vunpack.c.l.b16 %v227
    %v336 = vunpack.c.h.b16 %v227
    %v337 = vunpack.c.l.b16 %v228
    %v338 = vunpack.c.h.b16 %v228
    %v339 = vunpack.c.l.b16 %v229
    %v340 = vunpack.c.h.b16 %v229
    %v341 = vunpack.c.l.b16 %v230
    %v342 = vunpack.c.h.b16 %v230
    %v343 = vunpack.c.l.b16 %v231
    %v344 = vunpack.c.h.b16 %v231
    %v345 = vunpack.c.l.b16 %v232
    %v346 = vunpack.c.h.b16 %v232
    %v347 = vunpack.c.l.b16 %v233
    %v348 = vunpack.c.h.b16 %v233
    %v349 = vunpack.c.l.b16 %v234
    %v350 = vunpack.c.h.b16 %v234
    %v351 = vunpack.c.l.b16 %v235
    %v352 = vunpack.c.h.b16 %v235
    %v353 = vunpack.c.l.b16 %v236
    %v354 = vunpack.c.h.b16 %v236
    %v355 = vunpack.c.l.b16 %v237
    %v356 = vunpack.c.h.b16 %v237
    %v357 = vunpack.c.l.b16 %v238
    %v358 = vunpack.c.h.b16 %v238
    %v359 = vpack.c.b16 %v291, %v289
    %v360 = vpack.c.b16 %v292, %v290
    %v361 = vpack.c.b16 %v295, %v293
    %v362 = vpack.c.b16 %v296, %v294
    %v363 = vpack.c.b16 %v299, %v297
    %v364 = vpack.c.b16 %v300, %v298
    %v365 = vpack.c.b16 %v303, %v301
    %v366 = vpack.c.b16 %v304, %v302
    %v367 = vpack.c.b16 %v307, %v305
    %v368 = vpack.c.b16 %v308, %v306
    %v369 = vpack.c.b16 %v311, %v309
    %v370 = vpack.c.b16 %v312, %v310
    %v371 = vpack.c.b16 %v315, %v313
    %v372 = vpack.c.b16 %v316, %v314
    %v373 = vpack.c.b16 %v319, %v317
    %v374 = vpack.c.b16 %v320, %v318
    %v375 = vpack.c.b16 %v323, %v321
    %v376 = vpack.c.b16 %v324, %v322
    %v377 = vpack.c.b16 %v327, %v325
    %v378 = vpack.c.b16 %v328, %v326
    %v379 = vpack.c.b16 %v331, %v329
    %v380 = vpack.c.b16 %v332, %v330
    %v381 = vpack.c.b16 %v335, %v333
    %v382 = vpack.c.b16 %v336, %v334
    %v383 = vpack.c.b16 %v339, %v337
    %v384 = vpack.c.b16 %v340, %v338
    %v385 = vpack.c.b16 %v343, %v341
    %v386 = vpack.c.b16 %v344, %v342
    %v387 = vpack.c.b16 %v347, %v345
    %v388 = vpack.c.b16 %v348, %v346
    %v389 = vpack.c.b16 %v351, %v349
    %v390 = vpack.c.b16 %v352, %v350
    %v391 = vpack.c.b16 %v355, %v353
    %v392 = vpack.c.b16 %v356, %v354
    %v393 = vpack.c.b16 %v357, %v357
    %v394 = vpack.c.b16 %v358, %v358
    %vm429 = vcmask 146432
    %v431 = vsel %vm429, %v241, 0
    %vm433 = vcmask 1040384
    %v435 = vsel %vm433, %v393, 0
    %v438 = vsel %vm433, %v394, 0
    %440 = vmatprep.subr.bf16.mxu0 %v360
    %441 = vmatpush1.bf16.msra.mxu0 %v359
    %442 = vmatprep.subr.bf16.mxu0 %v362
    %443 = vmatpush1.bf16.msra.mxu0 %v361
    %444 = vmatprep.subr.bf16.mxu0 %v364
    %445 = vmatpush1.bf16.msra.mxu0 %v363
    %446 = vmatprep.subr.bf16.mxu0 %v366
    %447 = vmatpush1.bf16.msra.mxu0 %v365
    %448 = vmatprep.subr.bf16.mxu0 %v368
    %449 = vmatpush1.bf16.msra.mxu0 %v367
    %450 = vmatprep.subr.bf16.mxu0 %v370
    %451 = vmatpush1.bf16.msra.mxu0 %v369
    %452 = vmatprep.subr.bf16.mxu0 %v372
    %453 = vmatpush1.bf16.msra.mxu0 %v371
    %454 = vmatprep.subr.bf16.mxu0 %v374
    %455 = vmatpush1.bf16.msra.mxu0 %v373
    %456 = vmatprep.subr.bf16.mxu0 %v376
    %457 = vmatpush1.bf16.msra.mxu0 %v375
    %458 = vmatprep.subr.bf16.mxu0 %v378
    %459 = vmatpush1.bf16.msra.mxu0 %v377
    %460 = vmatprep.subr.bf16.mxu0 %v380
    %461 = vmatpush1.bf16.msra.mxu0 %v379
    %462 = vmatprep.subr.bf16.mxu0 %v382
    %463 = vmatpush1.bf16.msra.mxu0 %v381
    %464 = vmatprep.subr.bf16.mxu0 %v384
    %465 = vmatpush1.bf16.msra.mxu0 %v383
    %466 = vmatprep.subr.bf16.mxu0 %v386
    %467 = vmatpush1.bf16.msra.mxu0 %v385
    %468 = vmatprep.subr.bf16.mxu0 %v388
    %469 = vmatpush1.bf16.msra.mxu0 %v387
    %470 = vmatprep.subr.bf16.mxu0 %v390
    %471 = vmatpush1.bf16.msra.mxu0 %v389
    %472 = vmatprep.mubr.bf16.mxu0 %v240
    %473 = vmatmul.mubr.bf16.gmra.mrb[0].mxu0 %v239
    %v474 = vpop.f32.mrb[0].mxu0
    %v475 = vadd.f32 %v247, %v474
    %v476 = vpop.f32.mrb[0].mxu0
    %v477 = vadd.f32 %v251, %v476
    %v478 = vpop.f32.mrb[0].mxu0
    %v479 = vadd.f32 %v247, %v478
    %v480 = vpop.f32.mrb[0].mxu0
    %v481 = vadd.f32 %v251, %v480
    %482 = vdwg.mxu0
    %483 = vmatprep.subr.bf16.mxu0 %v392
    %484 = vmatpush1.bf16.msra.mxu0 %v391
    %485 = vmatprep.subr.bf16.mxu0 %v438
    %486 = vmatpush1.bf16.msra.mxu0 %v435
    %487 = vmatprep.subr.bf16.mxu0 0
    %488 = vmatpush1.bf16.msra.mxu0 0
    %489 = vmatprep.subr.bf16.mxu0 0
    %490 = vmatpush1.bf16.msra.mxu0 0
    %491 = vmatprep.subr.bf16.mxu0 0
    %492 = vmatpush1.bf16.msra.mxu0 0
    %493 = vmatprep.subr.bf16.mxu0 0
    %494 = vmatpush1.bf16.msra.mxu0 0
    %495 = vmatprep.subr.bf16.mxu0 0
    %496 = vmatpush1.bf16.msra.mxu0 0
    %497 = vmatprep.subr.bf16.mxu0 0
    %498 = vmatpush1.bf16.msra.mxu0 0
    %499 = vmatprep.subr.bf16.mxu0 0
    %500 = vmatpush1.bf16.msra.mxu0 0
    %501 = vmatprep.subr.bf16.mxu0 0
    %502 = vmatpush1.bf16.msra.mxu0 0
    %503 = vmatprep.subr.bf16.mxu0 0
    %504 = vmatpush1.bf16.msra.mxu0 0
    %505 = vmatprep.subr.bf16.mxu0 0
    %506 = vmatpush1.bf16.msra.mxu0 0
    %507 = vmatprep.subr.bf16.mxu0 0
    %508 = vmatpush1.bf16.msra.mxu0 0
    %509 = vmatprep.subr.bf16.mxu0 0
    %510 = vmatpush1.bf16.msra.mxu0 0
    %511 = vmatprep.subr.bf16.mxu0 0
    %512 = vmatpush1.bf16.msra.mxu0 0
    %513 = vmatprep.subr.bf16.mxu0 0
    %514 = vmatpush1.bf16.msra.mxu0 0
    %515 = vmatprep.mubr.bf16.mxu0 0
    %516 = vmatmul.mubr.bf16.gmra.mrb[0].mxu0 %v431
    %v517 = vpop.f32.mrb[0].mxu0
    %v518 = vadd.f32 %v475, %v517
    %v519 = vpop.f32.mrb[0].mxu0
    %v520 = vadd.f32 %v477, %v519
    %v521 = vpop.f32.mrb[0].mxu0
    %v522 = vadd.f32 %v479, %v521
    %v523 = vpop.f32.mrb[0].mxu0
    %v524 = vadd.f32 %v481, %v523
    %525 = vdwg.mxu0
    %v526 = vmax.f32 %v518, 0.0
    %v527 = vmax.f32 %v520, 0.0
    %v528 = vmax.f32 %v522, 0.0
    %v529 = vmax.f32 %v524, 0.0
    %v530 = vld [vmem:[%s3] sm:$0xf]
    %v531 = vld [vmem:[%s3 + $0x4] sm:$0xf]
    %v532 = vld [vmem:[%s3 + $0x8] sm:$0xf]
    %v533 = vld [vmem:[%s3 + $0xc] sm:$0xf]
    %v534 = vld [vmem:[%s3 + $0x10] sm:$0xf]
    %v535 = vld [vmem:[%s3 + $0x14] sm:$0xf]
    %v536 = vld [vmem:[%s3 + $0x18] sm:$0xf]
    %v537 = vld [vmem:[%s3 + $0x1c] sm:$0xf]
    %v538 = vld [vmem:[%s3 + $0x20] sm:$0xf]
    %v539 = vld [vmem:[%s3 + $0x24] sm:$0xf]
    %v540 = vld [vmem:[%s3 + $0x28] sm:$0xf]
    %v541 = vld [vmem:[%s3 + $0x2c] sm:$0xf]
    %v542 = vld [vmem:[%s3 + $0x30] sm:$0xf]
    %v543 = vld [vmem:[%s3 + $0x34] sm:$0xf]
    %v544 = vld [vmem:[%s3 + $0x38] sm:$0xf]
    %v545 = vld [vmem:[%s3 + $0x3c] sm:$0xf]
    %v546 = vld [vmem:[%s3 + $0x40] sm:$0xf]
    %v547 = vpack.c.bf16 %v528, %v526
    %v548 = vpack.c.bf16 %v529, %v527
    %v549 = vld [vmem:[%s9] sm:$0x1]
    %v551 = vlaneseq
    %v552 = vshrl.u32 %v551, 7
    %v553 = vsub.s32 0, %v552
    %v554 = vrot.slane %v549, %v553
    %v573 = vunpack.c.l.b16 %v530
    %v574 = vunpack.c.l.b16 %v531
    %v575 = vunpack.c.l.b16 %v532
    %v576 = vunpack.c.l.b16 %v533
    %v577 = vunpack.c.l.b16 %v534
    %v578 = vunpack.c.l.b16 %v535
    %v579 = vunpack.c.l.b16 %v536
    %v580 = vunpack.c.l.b16 %v537
    %v581 = vunpack.c.l.b16 %v538
    %v582 = vunpack.c.l.b16 %v539
    %v583 = vunpack.c.l.b16 %v540
    %v584 = vunpack.c.l.b16 %v541
    %v585 = vunpack.c.l.b16 %v542
    %v586 = vunpack.c.l.b16 %v543
    %v587 = vunpack.c.l.b16 %v544
    %v588 = vunpack.c.l.b16 %v545
    %v589 = vunpack.c.l.b16 %v546
    %v590 = vpack.c.b16 %v574, %v573
    %v591 = vpack.c.b16 %v576, %v575
    %v592 = vpack.c.b16 %v578, %v577
    %v593 = vpack.c.b16 %v580, %v579
    %v594 = vpack.c.b16 %v582, %v581
    %v595 = vpack.c.b16 %v584, %v583
    %v596 = vpack.c.b16 %v586, %v585
    %v597 = vpack.c.b16 %v588, %v587
    %v598 = vpack.c.b16 %v589, %v589
    %vm607 = vcmask 56320
    %v609 = vsel %vm607, %v548, 0
    %vm611 = vcmask 1042432
    %vm612 = vcmask 1043456
    %v613 = vsel %vm611, 4294967295, 65535
    %v614 = vsel %vm612, %v613, 0
    %v616 = vand.u32 %v598, %v614
    %618 = vmatprep.subr.bf16.mxu0 0
    %619 = vmatpush1.bf16.msra.mxu0 %v590
    %620 = vmatprep.subr.bf16.mxu0 0
    %621 = vmatpush1.bf16.msra.mxu0 %v591
    %622 = vmatprep.subr.bf16.mxu0 0
    %623 = vmatpush1.bf16.msra.mxu0 %v592
    %624 = vmatprep.subr.bf16.mxu0 0
    %625 = vmatpush1.bf16.msra.mxu0 %v593
    %626 = vmatprep.subr.bf16.mxu0 0
    %627 = vmatpush1.bf16.msra.mxu0 %v594
    %628 = vmatprep.subr.bf16.mxu0 0
    %629 = vmatpush1.bf16.msra.mxu0 %v595
    %630 = vmatprep.subr.bf16.mxu0 0
    %631 = vmatpush1.bf16.msra.mxu0 %v596
    %632 = vmatprep.subr.bf16.mxu0 0
    %633 = vmatpush1.bf16.msra.mxu0 %v597
    %634 = vmatprep.subr.bf16.mxu0 0
    %635 = vmatpush1.bf16.msra.mxu0 %v616
    %636 = vmatprep.subr.bf16.mxu0 0
    %637 = vmatpush1.bf16.msra.mxu0 0
    %638 = vmatprep.subr.bf16.mxu0 0
    %639 = vmatpush1.bf16.msra.mxu0 0
    %640 = vmatprep.subr.bf16.mxu0 0
    %641 = vmatpush1.bf16.msra.mxu0 0
    %642 = vmatprep.subr.bf16.mxu0 0
    %643 = vmatpush1.bf16.msra.mxu0 0
    %644 = vmatprep.subr.bf16.mxu0 0
    %645 = vmatpush1.bf16.msra.mxu0 0
    %646 = vmatprep.subr.bf16.mxu0 0
    %647 = vmatpush1.bf16.msra.mxu0 0
    %648 = vmatprep.subr.bf16.mxu0 0
    %649 = vmatpush1.bf16.msra.mxu0 0
    %650 = vmatprep.mubr.bf16.mxu0 %v609
    %651 = vmatmul.mubr.bf16.gmra.mrb[0].mxu0 %v547
    %v652 = vpop.f32.mrb[0].mxu0
    %v653 = vadd.f32 %v554, %v652
    %v654 = vpop.f32.mrb[0].mxu0
    %v655 = vpop.f32.mrb[0].mxu0
    %v656 = vadd.f32 %v554, %v655
    %v657 = vpop.f32.mrb[0].mxu0
    %658 = vdwg.mxu0
    %v659 = vmax.f32 %v653, 0.0
    %v660 = vmax.f32 %v656, 0.0
    %v661 = vld [vmem:[%s4] sm:$0xf]
    %v662 = vld [vmem:[%s4 + $0x4] sm:$0xf]
    %v663 = vld [vmem:[%s4 + $0x8] sm:$0xf]
    %v664 = vld [vmem:[%s4 + $0xc] sm:$0xf]
    %v665 = vld [vmem:[%s4 + $0x10] sm:$0xf]
    %v666 = vld [vmem:[%s4 + $0x14] sm:$0xf]
    %v667 = vld [vmem:[%s4 + $0x18] sm:$0xf]
    %v668 = vld [vmem:[%s4 + $0x1c] sm:$0xf]
    %v669 = vld [vmem:[%s4 + $0x20] sm:$0x1]
    %v670 = vpack.c.bf16 %v660, %v659
    %v671 = vld [vmem:[%s10] sm:$0x1]
    %v673 = vlaneseq
    %v674 = vshrl.u32 %v673, 7
    %v675 = vsub.s32 0, %v674
    %v676 = vrot.slane %v671, %v675
    %v687 = vunpack.c.l.b16 %v661
    %v688 = vunpack.c.l.b16 %v662
    %v689 = vunpack.c.l.b16 %v663
    %v690 = vunpack.c.l.b16 %v664
    %v691 = vunpack.c.l.b16 %v665
    %v692 = vunpack.c.l.b16 %v666
    %v693 = vunpack.c.l.b16 %v667
    %v694 = vunpack.c.l.b16 %v668
    %v695 = vunpack.c.l.b16 %v669
    %v696 = vpack.c.b16 %v688, %v687
    %v697 = vpack.c.b16 %v690, %v689
    %v698 = vpack.c.b16 %v692, %v691
    %v699 = vpack.c.b16 %v694, %v693
    %v700 = vpack.c.b16 %v695, %v695
    %vm705 = vcmask 531456
    %v707 = vsel %vm705, %v670, 0
    %v709 = vsel 0, 4294967295, 65535
    %v710 = vsel %vm433, %v709, 0
    %v712 = vand.u32 %v700, %v710
    %714 = vmatprep.subr.bf16.mxu0 0
    %715 = vmatpush1.bf16.msra.mxu0 %v696
    %716 = vmatprep.subr.bf16.mxu0 0
    %717 = vmatpush1.bf16.msra.mxu0 %v697
    %718 = vmatprep.subr.bf16.mxu0 0
    %719 = vmatpush1.bf16.msra.mxu0 %v698
    %720 = vmatprep.subr.bf16.mxu0 0
    %721 = vmatpush1.bf16.msra.mxu0 %v699
    %722 = vmatprep.subr.bf16.mxu0 0
    %723 = vmatpush1.bf16.msra.mxu0 %v712
    %724 = vmatprep.subr.bf16.mxu0 0
    %725 = vmatpush1.bf16.msra.mxu0 0
    %726 = vmatprep.subr.bf16.mxu0 0
    %727 = vmatpush1.bf16.msra.mxu0 0
    %728 = vmatprep.subr.bf16.mxu0 0
    %729 = vmatpush1.bf16.msra.mxu0 0
    %730 = vmatprep.subr.bf16.mxu0 0
    %731 = vmatpush1.bf16.msra.mxu0 0
    %732 = vmatprep.subr.bf16.mxu0 0
    %733 = vmatpush1.bf16.msra.mxu0 0
    %734 = vmatprep.subr.bf16.mxu0 0
    %735 = vmatpush1.bf16.msra.mxu0 0
    %736 = vmatprep.subr.bf16.mxu0 0
    %737 = vmatpush1.bf16.msra.mxu0 0
    %738 = vmatprep.subr.bf16.mxu0 0
    %739 = vmatpush1.bf16.msra.mxu0 0
    %740 = vmatprep.subr.bf16.mxu0 0
    %741 = vmatpush1.bf16.msra.mxu0 0
    %742 = vmatprep.subr.bf16.mxu0 0
    %743 = vmatpush1.bf16.msra.mxu0 0
    %744 = vmatprep.subr.bf16.mxu0 0
    %745 = vmatpush1.bf16.msra.mxu0 0
    %746 = vmatprep.mubr.bf16.mxu0 0
    %747 = vmatmul.mubr.bf16.gmra.mrb[0].mxu0 %v707
    %v748 = vpop.f32.mrb[0].mxu0
    %v749 = vadd.f32 %v676, %v748
    %v750 = vpop.f32.mrb[0].mxu0
    %v751 = vpop.f32.mrb[0].mxu0
    %v752 = vadd.f32 %v676, %v751
    %v753 = vpop.f32.mrb[0].mxu0
    %754 = vdwg.mxu0
    %v755 = vmax.f32 %v749, 0.0
    %v756 = vmax.f32 %v752, 0.0
    %v757 = vld [vmem:[%s5] sm:$0xf]
    %v758 = vld [vmem:[%s5 + $0x4] sm:$0xf]
    %v759 = vld [vmem:[%s5 + $0x8] sm:$0xf]
    %v760 = vld [vmem:[%s5 + $0xc] sm:$0x7]
    %v761 = vpack.c.bf16 %v756, %v755
    %v762 = vld [vmem:[%s11] sm:$0x1]
    %v764 = vlaneseq
    %v765 = vshrl.u32 %v764, 7
    %v766 = vsub.s32 0, %v765
    %v767 = vrot.slane %v762, %v766
    %v773 = vunpack.c.l.b16 %v757
    %v774 = vunpack.c.l.b16 %v758
    %v775 = vunpack.c.l.b16 %v759
    %v776 = vunpack.c.l.b16 %v760
    %v777 = vpack.c.b16 %v774, %v773
    %v778 = vpack.c.b16 %v776, %v775
    %vm780 = vcmask 244736
    %v782 = vsel %vm780, %v761, 0
    %vm784 = vcmask 1046528
    %v786 = vsel %vm784, %v778, 0
    %788 = vmatprep.subr.bf16.mxu0 0
    %789 = vmatpush1.bf16.msra.mxu0 %v777
    %790 = vmatprep.subr.bf16.mxu0 0
    %791 = vmatpush1.bf16.msra.mxu0 %v786
    %792 = vmatprep.subr.bf16.mxu0 0
    %793 = vmatpush1.bf16.msra.mxu0 0
    %794 = vmatprep.subr.bf16.mxu0 0
    %795 = vmatpush1.bf16.msra.mxu0 0
    %796 = vmatprep.subr.bf16.mxu0 0
    %797 = vmatpush1.bf16.msra.mxu0 0
    %798 = vmatprep.subr.bf16.mxu0 0
    %799 = vmatpush1.bf16.msra.mxu0 0
    %800 = vmatprep.subr.bf16.mxu0 0
    %801 = vmatpush1.bf16.msra.mxu0 0
    %802 = vmatprep.subr.bf16.mxu0 0
    %803 = vmatpush1.bf16.msra.mxu0 0
    %804 = vmatprep.subr.bf16.mxu0 0
    %805 = vmatpush1.bf16.msra.mxu0 0
    %806 = vmatprep.subr.bf16.mxu0 0
    %807 = vmatpush1.bf16.msra.mxu0 0
    %808 = vmatprep.subr.bf16.mxu0 0
    %809 = vmatpush1.bf16.msra.mxu0 0
    %810 = vmatprep.subr.bf16.mxu0 0
    %811 = vmatpush1.bf16.msra.mxu0 0
    %812 = vmatprep.subr.bf16.mxu0 0
    %813 = vmatpush1.bf16.msra.mxu0 0
    %814 = vmatprep.subr.bf16.mxu0 0
    %815 = vmatpush1.bf16.msra.mxu0 0
    %816 = vmatprep.subr.bf16.mxu0 0
    %817 = vmatpush1.bf16.msra.mxu0 0
    %818 = vmatprep.subr.bf16.mxu0 0
    %819 = vmatpush1.bf16.msra.mxu0 0
    %820 = vmatprep.mubr.bf16.mxu0 0
    %821 = vmatmul.mubr.bf16.gmra.mrb[0].mxu0 %v782
    %v822 = vpop.f32.mrb[0].mxu0
    %v823 = vadd.f32 %v767, %v822
    %v824 = vpop.f32.mrb[0].mxu0
    %v825 = vpop.f32.mrb[0].mxu0
    %v826 = vadd.f32 %v767, %v825
    %v827 = vpop.f32.mrb[0].mxu0
    %828 = vdwg.mxu0
    %v829 = vmax.f32 %v823, 0.0
    %v830 = vmax.f32 %v826, 0.0
    %v831 = vld [vmem:[%s6] sm:$0xf]
    %v832 = vld [vmem:[%s6 + $0x4] sm:$0x1]
    %v833 = vpack.c.bf16 %v830, %v829
    %v834 = vld [vmem:[%s12] sm:$0x1]
    %v836 = vlaneseq
    %v837 = vshrl.u32 %v836, 7
    %v838 = vsub.s32 0, %v837
    %v839 = vrot.slane %v834, %v838
    %v843 = vunpack.c.l.b16 %v831
    %v844 = vunpack.c.l.b16 %v832
    %v845 = vpack.c.b16 %v844, %v843
    %vm846 = vcmask 80896
    %v848 = vsel %vm846, %v833, 0
    %vm850 = vcmask 1044480
    %v852 = vsel %vm850, %v845, 0
    %854 = vmatprep.subr.bf16.mxu0 0
    %855 = vmatpush1.bf16.msra.mxu0 %v852
    %856 = vmatprep.subr.bf16.mxu0 0
    %857 = vmatpush1.bf16.msra.mxu0 0
    %858 = vmatprep.subr.bf16.mxu0 0
    %859 = vmatpush1.bf16.msra.mxu0 0
    %860 = vmatprep.subr.bf16.mxu0 0
    %861 = vmatpush1.bf16.msra.mxu0 0
    %862 = vmatprep.subr.bf16.mxu0 0
    %863 = vmatpush1.bf16.msra.mxu0 0
    %864 = vmatprep.subr.bf16.mxu0 0
    %865 = vmatpush1.bf16.msra.mxu0 0
    %866 = vmatprep.subr.bf16.mxu0 0
    %867 = vmatpush1.bf16.msra.mxu0 0
    %868 = vmatprep.subr.bf16.mxu0 0
    %869 = vmatpush1.bf16.msra.mxu0 0
    %870 = vmatprep.subr.bf16.mxu0 0
    %871 = vmatpush1.bf16.msra.mxu0 0
    %872 = vmatprep.subr.bf16.mxu0 0
    %873 = vmatpush1.bf16.msra.mxu0 0
    %874 = vmatprep.subr.bf16.mxu0 0
    %875 = vmatpush1.bf16.msra.mxu0 0
    %876 = vmatprep.subr.bf16.mxu0 0
    %877 = vmatpush1.bf16.msra.mxu0 0
    %878 = vmatprep.subr.bf16.mxu0 0
    %879 = vmatpush1.bf16.msra.mxu0 0
    %880 = vmatprep.subr.bf16.mxu0 0
    %881 = vmatpush1.bf16.msra.mxu0 0
    %882 = vmatprep.subr.bf16.mxu0 0
    %883 = vmatpush1.bf16.msra.mxu0 0
    %884 = vmatprep.subr.bf16.mxu0 0
    %885 = vmatpush1.bf16.msra.mxu0 0
    %886 = vmatprep.mubr.bf16.mxu0 0
    %887 = vmatmul.mubr.bf16.gmra.mrb[0].mxu0 %v848
    %v888 = vpop.f32.mrb[0].mxu0
    %v889 = vadd.f32 %v839, %v888
    %v890 = vpop.f32.mrb[0].mxu0
    %v891 = vpop.f32.mrb[0].mxu0
    %v892 = vadd.f32 %v839, %v891
    %v893 = vpop.f32.mrb[0].mxu0
    %894 = vdwg.mxu0
    %v895 = vpack.c.bf16 %v892, %v889
    %v897 = vunpack.c.l.b16 %v895
    %v898 = vunpack.c.h.b16 %v895
    %v899 = vpack.c.b16 %v897, %v897
    %v900 = vpack.c.b16 %v898, %v898
    %903 = vst [vmem:[#allocation2] sm:$0xf] %v899
    %904 = vst [vmem:[#allocation2 + $0x4] sm:$0xf] %v900
    // Predicated region
    $region54: #{tpu_custom_call.1} parent=1 // pred_check
      _
    $region55: #{tpu_custom_call.1} parent=1 // pred_check_branch
      %906 = sbr.rel (0) target = $region57
    $region56: #{tpu_custom_call.1} parent=1 // pred_region
      %s908 = ssub.s32 128, 128
      %909 = vsyncadd [#allocation3], %s908
      %s910 = sshll.u32 [#allocation2], 4
      %s911 = int_to_ptr.vmem [resolvable:$true] %s910
      %916 = dma.vmem_to_hbm [thread:$0]  %s911, 128, %s13, [#allocation3], 64, 64, 4
    $region57: #{tpu_custom_call.1} parent=1 // pred_fallthru
      _
    // Predicated region
    $region58: #{tpu_custom_call.1} parent=1 // pred_check
      _
    $region59: #{tpu_custom_call.1} parent=1 // pred_check_branch
      %918 = sbr.rel (0) target = $region61
    $region60: #{tpu_custom_call.1} parent=1 // pred_region
      %919 = dma.done [#allocation3], 128
    $region61: #{tpu_custom_call.1} parent=1 // pred_fallthru
      _
    %920 = vsyncpa [#allocation3], 1

</llo_original>
